<compile_context>
chip_gen: v7x
topology: tpu7x:2x2x1
jax: 0.10.0
libtpu: 0.0.40
codegen_flags: <defaults>
</compile_context>

<pallas_src>
import functools

import jax
import jax.numpy as jnp
from jax.experimental import pallas as pl
from jax.experimental.pallas import tpu as pltpu


# ------------------------------ config --------------------------------------

FEAT_DIM = 512     # backbone output dim (resnet-style)
OUT_DIM = 55       # self.out_dim
EQUI_DIMS = 128    # args.equi_dims
INV_PART = False   # args.inv_part -> in_dims = equi_dims
DEEP_END = False   # args.deep_end -> single Linear head
STEM_CH = 32       # stand-in backbone width
IN_DIMS = EQUI_DIMS if not INV_PART else FEAT_DIM - EQUI_DIMS


# ----------------------------- Pallas kernels --------------------------------

def _conv_gap_kernel(cols_ref, w_ref, b_ref, o_ref, *, inv_hw):
    """Conv-as-matmul + ReLU fused with global average pooling.

    cols_ref : (1, TS, K)   bf16 im2col tile for batch b, spatial tile s
    w_ref    : (K, C)       bf16 conv weights (VMEM-resident across the grid)
    b_ref    : (1, C)       f32 conv bias
    o_ref    : (B, C)       f32 pooled features; VMEM-resident accumulator
    """
    b = pl.program_id(0)
    s = pl.program_id(1)

    @pl.when(jnp.logical_and(b == 0, s == 0))
    def _():
        o_ref[...] = jnp.zeros_like(o_ref)

    x = cols_ref[0]                                              # (TS, K) bf16
    h = jnp.dot(x, w_ref[...], preferred_element_type=jnp.float32)
    h = jnp.maximum(h + b_ref[...], 0.0)                         # (TS, C) f32
    part = jnp.sum(h, axis=0, keepdims=True) * inv_hw            # (1, C)

    # Accumulate the partial pooled sum into row `b` of the resident output.
    row = jax.lax.broadcasted_iota(jnp.int32, o_ref.shape, 0)    # (B, C)
    o_ref[...] = o_ref[...] + jnp.where(row == b, part, 0.0).astype(o_ref.dtype)


def _proj_head_kernel(f_ref, wp_ref, bp_ref, wh_ref, bh_ref, o_ref):
    """Fused backbone projection (already sliced to the equi columns) + head."""
    h = jnp.dot(f_ref[...], wp_ref[...], preferred_element_type=jnp.float32)
    h = jnp.maximum(h + bp_ref[...], 0.0)                        # (B, IN_DIMS) f32
    out = jnp.dot(h.astype(wh_ref.dtype), wh_ref[...],
                  preferred_element_type=jnp.float32)
    o_ref[...] = (out + bh_ref[...]).astype(o_ref.dtype)


# ------------------------------ wrappers --------------------------------------

def conv_gap_pallas(cols, w, b, hw):
    """[B, HW, K] im2col (bf16) -> pooled [B, C] features (f32)."""
    B, HW, K = cols.shape
    _, Cout = w.shape
    # Spatial tile size: large multiple of 8 that divides HW (toy sizes).
    if HW % 512 == 0:
        TS = 512
    elif HW % 256 == 0:
        TS = 256
    elif HW % 128 == 0:
        TS = 128
    else:
        TS = HW  # full-extent block is always legal

    cost = pl.CostEstimate(
        flops=2 * B * HW * K * Cout,
        transcendentals=0,
        bytes_accessed=B * HW * K * 2 + K * Cout * 2 + Cout * 4 + B * Cout * 4,
    )
    return pl.pallas_call(
        functools.partial(_conv_gap_kernel, inv_hw=1.0 / HW),
        out_shape=jax.ShapeDtypeStruct((B, Cout), jnp.float32),
        grid=(B, HW // TS),
        in_specs=[
            pl.BlockSpec((1, TS, K), lambda b, s: (b, s, 0)),
            pl.BlockSpec((K, Cout), lambda b, s: (0, 0)),
            pl.BlockSpec((1, Cout), lambda b, s: (0, 0)),
        ],
        out_specs=pl.BlockSpec((B, Cout), lambda b, s: (0, 0)),
        # The pooled output is a single resident accumulator block, so both
        # grid axes must be "arbitrary" (no cross-core races on the same block).
        compiler_params=pltpu.CompilerParams(
            dimension_semantics=("arbitrary", "arbitrary")),
        cost_estimate=cost,
    )(cols, w, b)


def proj_head_pallas(feat, wp, bp, wh, bh):
    """Fused proj(equi slice) + ReLU + Linear head in one kernel."""
    B, C = feat.shape
    _, E = wp.shape
    _, N = wh.shape
    return pl.pallas_call(
        _proj_head_kernel,
        out_shape=jax.ShapeDtypeStruct((B, N), jnp.float32),
        grid=(1,),
        in_specs=[
            pl.BlockSpec((B, C), lambda i: (0, 0)),
            pl.BlockSpec((C, E), lambda i: (0, 0)),
            pl.BlockSpec((1, E), lambda i: (0, 0)),
            pl.BlockSpec((E, N), lambda i: (0, 0)),
            pl.BlockSpec((1, N), lambda i: (0, 0)),
        ],
        out_specs=pl.BlockSpec((B, N), lambda i: (0, 0)),
        compiler_params=pltpu.CompilerParams(
            dimension_semantics=("arbitrary",)),
    )(feat, wp, bp, wh, bh)


# ------------------------------ model -----------------------------------------

def init_params(key, in_ch):
    k0, k1, k2 = jax.random.split(key, 3)

    def _w(k, shape, fan_in):
        return jax.random.normal(k, shape, jnp.float32) / jnp.sqrt(fan_in)

    return {
        # stand-in backbone
        "w_conv": _w(k0, (in_ch * 9, STEM_CH), in_ch * 9),
        "b_conv": jnp.zeros((STEM_CH,), jnp.float32),
        "w_proj": _w(k1, (STEM_CH, FEAT_DIM), STEM_CH),
        "b_proj": jnp.zeros((FEAT_DIM,), jnp.float32),
        # classification head (deep_end=False -> single Linear)
        "w_head": _w(k2, (IN_DIMS, OUT_DIM), IN_DIMS),
        "b_head": jnp.zeros((OUT_DIM,), jnp.float32),
    }


def prepare_params(raw):
    """One-time weight prep: bf16 casts, 2-D biases, and the equi-column slice
    of the projection folded into the weights (feat[..., -E:] == relu(x @ W[:, -E:] + b[-E:]))."""
    if not INV_PART:
        wp = raw["w_proj"][:, -EQUI_DIMS:]
        bp = raw["b_proj"][-EQUI_DIMS:]
    else:
        wp = raw["w_proj"][:, :-EQUI_DIMS]
        bp = raw["b_proj"][:-EQUI_DIMS]
    return {
        "w_conv": raw["w_conv"].astype(jnp.bfloat16),
        "b_conv": raw["b_conv"].reshape(1, -1).astype(jnp.float32),
        "w_proj_s": wp.astype(jnp.bfloat16),
        "b_proj_s": bp.reshape(1, -1).astype(jnp.float32),
        "w_head": raw["w_head"].astype(jnp.bfloat16),
        "b_head": raw["b_head"].reshape(1, -1).astype(jnp.float32),
    }


def model_forward(params, x):
    B, C, H, W = x.shape
    HW = H * W
    Kc = C * 9

    # ---- im2col in NHWC layout (feature axis lane-minor), bf16 ----
    x_nhwc = jnp.transpose(x, (0, 2, 3, 1)).astype(jnp.bfloat16)
    xp = jnp.pad(x_nhwc, ((0, 0), (1, 1), (1, 1), (0, 0)))
    taps = [xp[:, dy:dy + H, dx:dx + W, :] for dy in range(3) for dx in range(3)]
    cols = jnp.concatenate(taps, axis=-1).reshape(B, HW, Kc)
    # TODO(synk): for real image sizes, do the 3x3 conv inside the kernel as 9
    # shifted matmuls over an NHWC tile to avoid materializing the 9x im2col
    # tensor in HBM.

    # ---- backbone: conv + ReLU + GAP fused in one kernel ----
    feat = conv_gap_pallas(cols, params["w_conv"], params["b_conv"], HW)  # [B, STEM_CH] f32

    # torch.no_grad() over the backbone
    feat = jax.lax.stop_gradient(feat)
    wp = jax.lax.stop_gradient(params["w_proj_s"])
    bp = jax.lax.stop_gradient(params["b_proj_s"])

    # ---- fused: proj(equi slice) + ReLU + Linear(in_dims, 55) head ----
    out = proj_head_pallas(feat.astype(jnp.bfloat16), wp, bp,
                           params["w_head"], params["b_head"])
    return out  # [B, 55] f32


# TODO(synk): the true ResNet backbone (external `resnet` module) is not defined
# in the source file; a small conv+GAP+linear stand-in producing 512-d features
# is used instead.

if __name__ == "__main__":
    key = jax.random.PRNGKey(0)
    kx, kp = jax.random.split(key)
    x = jax.random.normal(kx, (2, 4, 16, 16), jnp.float32)  # NCHW
    params = prepare_params(init_params(kp, in_ch=4))

    fwd = jax.jit(model_forward)
    out = jax.block_until_ready(fwd(params, x))
    assert out.shape == (2, OUT_DIM) and out.dtype == jnp.float32
    print("KERNEL_OK")
</pallas_src>

<mosaic_0001>
module attributes {stable_mosaic.version = 11 : i64} {
  func.func @_conv_gap_kernel(%arg0: i32, %arg1: i32, %arg2: memref<1x256x36xbf16, #tpu.memory_space<vmem>>, %arg3: memref<36x32xbf16, #tpu.memory_space<vmem>>, %arg4: memref<1x32xf32, #tpu.memory_space<vmem>>, %arg5: memref<2x32xf32, #tpu.memory_space<vmem>>) attributes {dimension_semantics = [#tpu.dimension_semantics<arbitrary>, #tpu.dimension_semantics<arbitrary>], iteration_bounds = array<i64: 2, 1>, scalar_prefetch = 0 : i64, scratch_operands = 0 : i64, tpu.core_type = #tpu.core_type<tc>, window_params = [{transform_indices = @transform_0, window_bounds = array<i64: 1, 256, 36>}, {pipeline_mode = #tpu.pipeline_mode<synchronous>, transform_indices = @transform_1, window_bounds = array<i64: 36, 32>}, {pipeline_mode = #tpu.pipeline_mode<synchronous>, transform_indices = @transform_2, window_bounds = array<i64: 1, 32>}, {pipeline_mode = #tpu.pipeline_mode<synchronous>, transform_indices = @transform_3, window_bounds = array<i64: 2, 32>}]} {
    %c0_i32 = arith.constant 0 : i32
    %0 = arith.cmpi eq, %arg0, %c0_i32 : i32
    %c0_i32_0 = arith.constant 0 : i32
    %1 = arith.cmpi eq, %arg1, %c0_i32_0 : i32
    %2 = arith.andi %0, %1 : i1
    %3 = arith.extui %2 : i1 to i32
    %c0_i32_1 = arith.constant 0 : i32
    %4 = arith.cmpi ne, %3, %c0_i32_1 : i32
    scf.if %4 {
      %cst_16 = arith.constant 0.000000e+00 : f32
      %28 = vector.broadcast %cst_16 : f32 to vector<2x32xf32>
      %c0_17 = arith.constant 0 : index
      %c0_18 = arith.constant 0 : index
      %29 = vector.load %arg5[%c0_17, %c0_18] : memref<2x32xf32, #tpu.memory_space<vmem>>, vector<2x32xf32>
      tpu.vector_store %arg5[%c0_17, %c0_18], %28 {strides = array<i32>} : memref<2x32xf32, #tpu.memory_space<vmem>>, vector<2x32xf32>,
    } else {
    }
    %c0 = arith.constant 0 : index
    %c0_2 = arith.constant 0 : index
    %c0_3 = arith.constant 0 : index
    %5 = vector.load %arg2[%c0, %c0_2, %c0_3] : memref<1x256x36xbf16, #tpu.memory_space<vmem>>, vector<1x256x36xbf16>
    %6 = vector.shape_cast %5 : vector<1x256x36xbf16> to vector<256x36xbf16>
    %c0_4 = arith.constant 0 : index
    %c0_5 = arith.constant 0 : index
    %7 = vector.load %arg3[%c0_4, %c0_5] : memref<36x32xbf16, #tpu.memory_space<vmem>>, vector<36x32xbf16>
    %cst = arith.constant dense<0.000000e+00> : vector<256x32xf32>
    %8 = tpu.matmul %6, %7, %cst {dimension_numbers = #tpu.dot_dimension_numbers<[1], [0], [0], [1], [0, 0, 1, 1], [], []>} : vector<256x36xbf16>, vector<36x32xbf16>, vector<256x32xf32> -> vector<256x32xf32>
    %c0_6 = arith.constant 0 : index
    %c0_7 = arith.constant 0 : index
    %9 = vector.load %arg4[%c0_6, %c0_7] : memref<1x32xf32, #tpu.memory_space<vmem>>, vector<1x32xf32>
    %10 = vector.broadcast %9 : vector<1x32xf32> to vector<256x32xf32>
    %11 = arith.addf %8, %10 : vector<256x32xf32>
    %cst_8 = arith.constant 0.000000e+00 : f32
    %12 = vector.broadcast %cst_8 : f32 to vector<256x32xf32>
    %13 = arith.maximumf %11, %12 : vector<256x32xf32>
    %cst_9 = arith.constant dense<0.000000e+00> : vector<32xf32>
    %14 = vector.multi_reduction <add>, %13, %cst_9 [0] : vector<256x32xf32> to vector<32xf32>
    %15 = vector.shape_cast %14 : vector<32xf32> to vector<1x32xf32>
    %cst_10 = arith.constant 3.906250e-03 : f32
    %16 = vector.broadcast %cst_10 : f32 to vector<1x32xf32>
    %17 = arith.mulf %15, %16 : vector<1x32xf32>
    %18 = tpu.iota {dimensions = array<i32: 0>} : vector<2x32xi32>
    %c0_11 = arith.constant 0 : index
    %c0_12 = arith.constant 0 : index
    %19 = vector.load %arg5[%c0_11, %c0_12] : memref<2x32xf32, #tpu.memory_space<vmem>>, vector<2x32xf32>
    %20 = vector.broadcast %arg0 : i32 to vector<2x32xi32>
    %21 = arith.cmpi eq, %18, %20 : vector<2x32xi32>
    %cst_13 = arith.constant 0.000000e+00 : f32
    %22 = vector.shape_cast %17 : vector<1x32xf32> to vector<1x32xf32>
    %23 = vector.broadcast %22 : vector<1x32xf32> to vector<2x32xf32>
    %24 = vector.broadcast %cst_13 : f32 to vector<2x32xf32>
    %25 = arith.select %21, %23, %24 : vector<2x32xi1>, vector<2x32xf32>
    %26 = arith.addf %19, %25 : vector<2x32xf32>
    %c0_14 = arith.constant 0 : index
    %c0_15 = arith.constant 0 : index
    %27 = vector.load %arg5[%c0_14, %c0_15] : memref<2x32xf32, #tpu.memory_space<vmem>>, vector<2x32xf32>
    tpu.vector_store %arg5[%c0_14, %c0_15], %26 {strides = array<i32>} : memref<2x32xf32, #tpu.memory_space<vmem>>, vector<2x32xf32>,
    return
  }
  func.func @transform_0(%arg0: i32, %arg1: i32) -> (i32, i32, i32) {
    %c0_i32 = arith.constant 0 : i32
    %c0_i32_0 = arith.constant 0 : i32
    return %arg0, %arg1, %c0_i32 : i32, i32, i32
  }
  func.func @transform_1(%arg0: i32, %arg1: i32) -> (i32, i32) {
    %c0_i32 = arith.constant 0 : i32
    %c0_i32_0 = arith.constant 0 : i32
    %c0_i32_1 = arith.constant 0 : i32
    return %c0_i32, %c0_i32_0 : i32, i32
  }
  func.func @transform_2(%arg0: i32, %arg1: i32) -> (i32, i32) {
    %c0_i32 = arith.constant 0 : i32
    %c0_i32_0 = arith.constant 0 : i32
    %c0_i32_1 = arith.constant 0 : i32
    return %c0_i32, %c0_i32_0 : i32, i32
  }
  func.func @transform_3(%arg0: i32, %arg1: i32) -> (i32, i32) {
    %c0_i32 = arith.constant 0 : i32
    %c0_i32_0 = arith.constant 0 : i32
    %c0_i32_1 = arith.constant 0 : i32
    return %c0_i32, %c0_i32_0 : i32, i32
  }
}

module attributes {stable_mosaic.version = 11 : i64} {
  func.func @_proj_head_kernel(%arg0: i32, %arg1: memref<2x32xbf16, #tpu.memory_space<vmem>>, %arg2: memref<32x128xbf16, #tpu.memory_space<vmem>>, %arg3: memref<1x128xf32, #tpu.memory_space<vmem>>, %arg4: memref<128x55xbf16, #tpu.memory_space<vmem>>, %arg5: memref<1x55xf32, #tpu.memory_space<vmem>>, %arg6: memref<2x55xf32, #tpu.memory_space<vmem>>) attributes {dimension_semantics = [#tpu.dimension_semantics<arbitrary>], iteration_bounds = array<i64: 1>, scalar_prefetch = 0 : i64, scratch_operands = 0 : i64, tpu.core_type = #tpu.core_type<tc>, window_params = [{pipeline_mode = #tpu.pipeline_mode<synchronous>, transform_indices = @transform_0, window_bounds = array<i64: 2, 32>}, {pipeline_mode = #tpu.pipeline_mode<synchronous>, transform_indices = @transform_1, window_bounds = array<i64: 32, 128>}, {pipeline_mode = #tpu.pipeline_mode<synchronous>, transform_indices = @transform_2, window_bounds = array<i64: 1, 128>}, {pipeline_mode = #tpu.pipeline_mode<synchronous>, transform_indices = @transform_3, window_bounds = array<i64: 128, 55>}, {pipeline_mode = #tpu.pipeline_mode<synchronous>, transform_indices = @transform_4, window_bounds = array<i64: 1, 55>}, {pipeline_mode = #tpu.pipeline_mode<synchronous>, transform_indices = @transform_5, window_bounds = array<i64: 2, 55>}]} {
    %c0 = arith.constant 0 : index
    %c0_0 = arith.constant 0 : index
    %0 = vector.load %arg1[%c0, %c0_0] : memref<2x32xbf16, #tpu.memory_space<vmem>>, vector<2x32xbf16>
    %c0_1 = arith.constant 0 : index
    %c0_2 = arith.constant 0 : index
    %1 = vector.load %arg2[%c0_1, %c0_2] : memref<32x128xbf16, #tpu.memory_space<vmem>>, vector<32x128xbf16>
    %cst = arith.constant dense<0.000000e+00> : vector<2x128xf32>
    %2 = tpu.matmul %0, %1, %cst {dimension_numbers = #tpu.dot_dimension_numbers<[1], [0], [0], [1], [0, 0, 1, 1], [], []>} : vector<2x32xbf16>, vector<32x128xbf16>, vector<2x128xf32> -> vector<2x128xf32>
    %c0_3 = arith.constant 0 : index
    %c0_4 = arith.constant 0 : index
    %3 = vector.load %arg3[%c0_3, %c0_4] : memref<1x128xf32, #tpu.memory_space<vmem>>, vector<1x128xf32>
    %4 = vector.broadcast %3 : vector<1x128xf32> to vector<2x128xf32>
    %5 = arith.addf %2, %4 : vector<2x128xf32>
    %cst_5 = arith.constant 0.000000e+00 : f32
    %6 = vector.broadcast %cst_5 : f32 to vector<2x128xf32>
    %7 = arith.maximumf %5, %6 : vector<2x128xf32>
    %8 = arith.truncf %7 : vector<2x128xf32> to vector<2x128xbf16>
    %c0_6 = arith.constant 0 : index
    %c0_7 = arith.constant 0 : index
    %9 = vector.load %arg4[%c0_6, %c0_7] : memref<128x55xbf16, #tpu.memory_space<vmem>>, vector<128x55xbf16>
    %cst_8 = arith.constant dense<0.000000e+00> : vector<2x55xf32>
    %10 = tpu.matmul %8, %9, %cst_8 {dimension_numbers = #tpu.dot_dimension_numbers<[1], [0], [0], [1], [0, 0, 1, 1], [], []>} : vector<2x128xbf16>, vector<128x55xbf16>, vector<2x55xf32> -> vector<2x55xf32>
    %c0_9 = arith.constant 0 : index
    %c0_10 = arith.constant 0 : index
    %11 = vector.load %arg5[%c0_9, %c0_10] : memref<1x55xf32, #tpu.memory_space<vmem>>, vector<1x55xf32>
    %12 = vector.broadcast %11 : vector<1x55xf32> to vector<2x55xf32>
    %13 = arith.addf %10, %12 : vector<2x55xf32>
    %c0_11 = arith.constant 0 : index
    %c0_12 = arith.constant 0 : index
    %14 = vector.load %arg6[%c0_11, %c0_12] : memref<2x55xf32, #tpu.memory_space<vmem>>, vector<2x55xf32>
    tpu.vector_store %arg6[%c0_11, %c0_12], %13 {strides = array<i32>} : memref<2x55xf32, #tpu.memory_space<vmem>>, vector<2x55xf32>,
    return
  }
  func.func @transform_0(%arg0: i32) -> (i32, i32) {
    %c0_i32 = arith.constant 0 : i32
    %c0_i32_0 = arith.constant 0 : i32
    %c0_i32_1 = arith.constant 0 : i32
    return %c0_i32, %c0_i32_0 : i32, i32
  }
  func.func @transform_1(%arg0: i32) -> (i32, i32) {
    %c0_i32 = arith.constant 0 : i32
    %c0_i32_0 = arith.constant 0 : i32
    %c0_i32_1 = arith.constant 0 : i32
    return %c0_i32, %c0_i32_0 : i32, i32
  }
  func.func @transform_2(%arg0: i32) -> (i32, i32) {
    %c0_i32 = arith.constant 0 : i32
    %c0_i32_0 = arith.constant 0 : i32
    %c0_i32_1 = arith.constant 0 : i32
    return %c0_i32, %c0_i32_0 : i32, i32
  }
  func.func @transform_3(%arg0: i32) -> (i32, i32) {
    %c0_i32 = arith.constant 0 : i32
    %c0_i32_0 = arith.constant 0 : i32
    %c0_i32_1 = arith.constant 0 : i32
    return %c0_i32, %c0_i32_0 : i32, i32
  }
  func.func @transform_4(%arg0: i32) -> (i32, i32) {
    %c0_i32 = arith.constant 0 : i32
    %c0_i32_0 = arith.constant 0 : i32
    %c0_i32_1 = arith.constant 0 : i32
    return %c0_i32, %c0_i32_0 : i32, i32
  }
  func.func @transform_5(%arg0: i32) -> (i32, i32) {
    %c0_i32 = arith.constant 0 : i32
    %c0_i32_0 = arith.constant 0 : i32
    %c0_i32_1 = arith.constant 0 : i32
    return %c0_i32, %c0_i32_0 : i32, i32
  }
}

</mosaic_0001>

<llo_original>
// kernel: model_forward.3
$region0: #{model_forward.3}
  #allocation0 [shape = 'u32[]', space=smem, size = 0x4, offset = 0x4, fixed_abs, tag = 'smem constant byte address 0x4 - core index']
  #allocation1 [shape = 'u32[144,128]{1,0:T(1,128)}', space=vmem, size = 0x12000, scoped, tag = 'internal scratch']
  %s0 = inlined_call_operand.vmem [shape: bf16[2,32], index: 0, kind: input, shape index: {}]
  %s1 = inlined_call_operand.vmem [shape: bf16[32,128], index: 1, kind: input, shape index: {}]
  %s2 = inlined_call_operand.vmem [shape: f32[1,128], index: 2, kind: input, shape index: {}]
  %s3 = inlined_call_operand.vmem [shape: bf16[128,55], index: 3, kind: input, shape index: {}]
  %s4 = inlined_call_operand.vmem [shape: f32[1,55], index: 4, kind: input, shape index: {}]
  %s5 = inlined_call_operand.hbm [shape: f32[2,55], index: 5, kind: output, shape index: {}]
  %s6 = sld [smem:[#allocation0]]
  $region30: #{model_forward.3} parent=0
    _
  %s8 = ssub.s32 1, %s6
  %s9 = scalar_select 0, %s8, %s6
  $region1: #{model_forward.3} parent=0
    #allocation2 [shape = 'u8[1024]{0}', space=vmem, size = 0x400, scoped, tag = 'output window, operand 0, single buffered']
    #allocation3 [shape = 's32[1]{0}', space=sflag, size = 0x4, scoped, tag = 'scoped memory for model_forward.3']
    %10 = vsyncpa [#allocation3], 0
    // Predicated region
    $region2: #{model_forward.3} parent=1 // pred_check
      _
    $region3: #{model_forward.3} parent=1 // pred_check_branch
      %12 = sbr.rel (0) target = $region5
    $region4: #{model_forward.3} parent=1 // pred_region
      _
    $region5: #{model_forward.3} parent=1 // pred_fallthru
      _
    // Predicated region
    $region6: #{model_forward.3} parent=1 // pred_check
      _
    $region7: #{model_forward.3} parent=1 // pred_check_branch
      %14 = sbr.rel (0) target = $region9
    $region8: #{model_forward.3} parent=1 // pred_region
      _
    $region9: #{model_forward.3} parent=1 // pred_fallthru
      _
    // Predicated region
    $region10: #{model_forward.3} parent=1 // pred_check
      _
    $region11: #{model_forward.3} parent=1 // pred_check_branch
      %16 = sbr.rel (0) target = $region13
    $region12: #{model_forward.3} parent=1 // pred_region
      _
    $region13: #{model_forward.3} parent=1 // pred_fallthru
      _
    // Predicated region
    $region14: #{model_forward.3} parent=1 // pred_check
      _
    $region15: #{model_forward.3} parent=1 // pred_check_branch
      %18 = sbr.rel (0) target = $region17
    $region16: #{model_forward.3} parent=1 // pred_region
      _
    $region17: #{model_forward.3} parent=1 // pred_fallthru
      _
    // Predicated region
    $region18: #{model_forward.3} parent=1 // pred_check
      _
    $region19: #{model_forward.3} parent=1 // pred_check_branch
      %20 = sbr.rel (0) target = $region21
    $region20: #{model_forward.3} parent=1 // pred_region
      _
    $region21: #{model_forward.3} parent=1 // pred_fallthru
      _
    %v22 = vld [vmem:[%s0] sm:$0x1]
    %v23 = vld [vmem:[%s1] sm:$0xf]
    %v24 = vld [vmem:[%s1 + $0x4] sm:$0xf]
    %v25 = vld [vmem:[%s1 + $0x8] sm:$0xf]
    %v26 = vld [vmem:[%s1 + $0xc] sm:$0xf]
    %v27 = vld [vmem:[%s2] sm:$0x1]
    %v29 = vlaneseq
    %v30 = vshrl.u32 %v29, 7
    %v31 = vsub.s32 0, %v30
    %v32 = vrot.slane %v27, %v31
    %v38 = vunpack.c.l.b16 %v23
    %v39 = vunpack.c.l.b16 %v24
    %v40 = vunpack.c.l.b16 %v25
    %v41 = vunpack.c.l.b16 %v26
    %v42 = vpack.c.b16 %v39, %v38
    %v43 = vpack.c.b16 %v41, %v40
    %vm46 = vcmask 261120
    %v48 = vsel %vm46, %v22, 0
    %50 = vmatprep.subr.bf16.mxu0 0
    %51 = vmatpush1.bf16.msra.mxu0 %v42
    %52 = vmatprep.subr.bf16.mxu0 0
    %53 = vmatpush1.bf16.msra.mxu0 %v43
    %54 = vmatprep.subr.bf16.mxu0 0
    %55 = vmatpush1.bf16.msra.mxu0 0
    %56 = vmatprep.subr.bf16.mxu0 0
    %57 = vmatpush1.bf16.msra.mxu0 0
    %58 = vmatprep.subr.bf16.mxu0 0
    %59 = vmatpush1.bf16.msra.mxu0 0
    %60 = vmatprep.subr.bf16.mxu0 0
    %61 = vmatpush1.bf16.msra.mxu0 0
    %62 = vmatprep.subr.bf16.mxu0 0
    %63 = vmatpush1.bf16.msra.mxu0 0
    %64 = vmatprep.subr.bf16.mxu0 0
    %65 = vmatpush1.bf16.msra.mxu0 0
    %66 = vmatprep.subr.bf16.mxu0 0
    %67 = vmatpush1.bf16.msra.mxu0 0
    %68 = vmatprep.subr.bf16.mxu0 0
    %69 = vmatpush1.bf16.msra.mxu0 0
    %70 = vmatprep.subr.bf16.mxu0 0
    %71 = vmatpush1.bf16.msra.mxu0 0
    %72 = vmatprep.subr.bf16.mxu0 0
    %73 = vmatpush1.bf16.msra.mxu0 0
    %74 = vmatprep.subr.bf16.mxu0 0
    %75 = vmatpush1.bf16.msra.mxu0 0
    %76 = vmatprep.subr.bf16.mxu0 0
    %77 = vmatpush1.bf16.msra.mxu0 0
    %78 = vmatprep.subr.bf16.mxu0 0
    %79 = vmatpush1.bf16.msra.mxu0 0
    %80 = vmatprep.subr.bf16.mxu0 0
    %81 = vmatpush1.bf16.msra.mxu0 0
    %82 = vmatprep.mubr.bf16.mxu0 0
    %83 = vmatmul.mubr.bf16.gmra.mrb[0].mxu0 %v48
    %v84 = vpop.f32.mrb[0].mxu0
    %v85 = vadd.f32 %v32, %v84
    %v86 = vpop.f32.mrb[0].mxu0
    %v87 = vpop.f32.mrb[0].mxu0
    %v88 = vpop.f32.mrb[0].mxu0
    %89 = vdwg.mxu0
    %v90 = vmax.f32 %v85, 0.0
    %v91 = vpack.c.bf16 %v90, %v90
    %v92 = vld [vmem:[%s3] sm:$0xf]
    %v93 = vld [vmem:[%s3 + $0x4] sm:$0xf]
    %v94 = vld [vmem:[%s3 + $0x8] sm:$0xf]
    %v95 = vld [vmem:[%s3 + $0xc] sm:$0xf]
    %v96 = vld [vmem:[%s3 + $0x10] sm:$0xf]
    %v97 = vld [vmem:[%s3 + $0x14] sm:$0xf]
    %v98 = vld [vmem:[%s3 + $0x18] sm:$0xf]
    %v99 = vld [vmem:[%s3 + $0x1c] sm:$0xf]
    %v100 = vld [vmem:[%s3 + $0x20] sm:$0xf]
    %v101 = vld [vmem:[%s3 + $0x24] sm:$0xf]
    %v102 = vld [vmem:[%s3 + $0x28] sm:$0xf]
    %v103 = vld [vmem:[%s3 + $0x2c] sm:$0xf]
    %v104 = vld [vmem:[%s3 + $0x30] sm:$0xf]
    %v105 = vld [vmem:[%s3 + $0x34] sm:$0xf]
    %v106 = vld [vmem:[%s3 + $0x38] sm:$0xf]
    %v107 = vld [vmem:[%s3 + $0x3c] sm:$0xf]
    %v108 = vld [vmem:[%s4] sm:$0x1]
    %v110 = vlaneseq
    %v111 = vshrl.u32 %v110, 7
    %v112 = vsub.s32 0, %v111
    %v113 = vrot.slane %v108, %v112
    %v131 = vunpack.c.l.b16 %v92
    %v132 = vunpack.c.l.b16 %v93
    %v133 = vunpack.c.l.b16 %v94
    %v134 = vunpack.c.l.b16 %v95
    %v135 = vunpack.c.l.b16 %v96
    %v136 = vunpack.c.l.b16 %v97
    %v137 = vunpack.c.l.b16 %v98
    %v138 = vunpack.c.l.b16 %v99
    %v139 = vunpack.c.l.b16 %v100
    %v140 = vunpack.c.l.b16 %v101
    %v141 = vunpack.c.l.b16 %v102
    %v142 = vunpack.c.l.b16 %v103
    %v143 = vunpack.c.l.b16 %v104
    %v144 = vunpack.c.l.b16 %v105
    %v145 = vunpack.c.l.b16 %v106
    %v146 = vunpack.c.l.b16 %v107
    %v147 = vpack.c.b16 %v132, %v131
    %v148 = vpack.c.b16 %v134, %v133
    %v149 = vpack.c.b16 %v136, %v135
    %v150 = vpack.c.b16 %v138, %v137
    %v151 = vpack.c.b16 %v140, %v139
    %v152 = vpack.c.b16 %v142, %v141
    %v153 = vpack.c.b16 %v144, %v143
    %v154 = vpack.c.b16 %v146, %v145
    %163 = vmatprep.subr.bf16.mxu0 0
    %164 = vmatpush1.bf16.msra.mxu0 %v147
    %165 = vmatprep.subr.bf16.mxu0 0
    %166 = vmatpush1.bf16.msra.mxu0 %v148
    %167 = vmatprep.subr.bf16.mxu0 0
    %168 = vmatpush1.bf16.msra.mxu0 %v149
    %169 = vmatprep.subr.bf16.mxu0 0
    %170 = vmatpush1.bf16.msra.mxu0 %v150
    %171 = vmatprep.subr.bf16.mxu0 0
    %172 = vmatpush1.bf16.msra.mxu0 %v151
    %173 = vmatprep.subr.bf16.mxu0 0
    %174 = vmatpush1.bf16.msra.mxu0 %v152
    %175 = vmatprep.subr.bf16.mxu0 0
    %176 = vmatpush1.bf16.msra.mxu0 %v153
    %177 = vmatprep.subr.bf16.mxu0 0
    %178 = vmatpush1.bf16.msra.mxu0 %v154
    %179 = vmatprep.subr.bf16.mxu0 0
    %180 = vmatpush1.bf16.msra.mxu0 0
    %181 = vmatprep.subr.bf16.mxu0 0
    %182 = vmatpush1.bf16.msra.mxu0 0
    %183 = vmatprep.subr.bf16.mxu0 0
    %184 = vmatpush1.bf16.msra.mxu0 0
    %185 = vmatprep.subr.bf16.mxu0 0
    %186 = vmatpush1.bf16.msra.mxu0 0
    %187 = vmatprep.subr.bf16.mxu0 0
    %188 = vmatpush1.bf16.msra.mxu0 0
    %189 = vmatprep.subr.bf16.mxu0 0
    %190 = vmatpush1.bf16.msra.mxu0 0
    %191 = vmatprep.subr.bf16.mxu0 0
    %192 = vmatpush1.bf16.msra.mxu0 0
    %193 = vmatprep.subr.bf16.mxu0 0
    %194 = vmatpush1.bf16.msra.mxu0 0
    %195 = vmatprep.mubr.bf16.mxu0 0
    %196 = vmatmul.mubr.bf16.gmra.mrb[0].mxu0 %v91
    %v197 = vpop.f32.mrb[0].mxu0
    %v198 = vadd.f32 %v113, %v197
    %v199 = vpop.f32.mrb[0].mxu0
    %v200 = vpop.f32.mrb[0].mxu0
    %v201 = vpop.f32.mrb[0].mxu0
    %202 = vdwg.mxu0
    %vm203 = vcmask 443392
    %204 = vst.msk [vmem:[#allocation2] sm:$0x3] %vm203, %v198
    // Predicated region
    $region22: #{model_forward.3} parent=1 // pred_check
      _
    $region23: #{model_forward.3} parent=1 // pred_check_branch
      %206 = sbr.rel (0) target = $region25
    $region24: #{model_forward.3} parent=1 // pred_region
      %s208 = ssub.s32 32, 32
      %209 = vsyncadd [#allocation3], %s208
      %s211 = sshll.u32 [#allocation2], 4
      %s212 = int_to_ptr.vmem [resolvable:$true] %s211
      %214 = dma.vmem_to_hbm [thread:$0]  %s212, 32, %s5, [#allocation3]
    $region25: #{model_forward.3} parent=1 // pred_fallthru
      _
    // Predicated region
    $region26: #{model_forward.3} parent=1 // pred_check
      _
    $region27: #{model_forward.3} parent=1 // pred_check_branch
      %216 = sbr.rel (0) target = $region29
    $region28: #{model_forward.3} parent=1 // pred_region
      %217 = dma.done [#allocation3], 32
    $region29: #{model_forward.3} parent=1 // pred_fallthru
      _
    %218 = vsyncpa [#allocation3], 1

// kernel: model_forward.2
$region0: #{model_forward.2}
  #allocation0 [shape = 'u32[]', space=smem, size = 0x4, offset = 0x4, fixed_abs, tag = 'smem constant byte address 0x4 - core index']
  #allocation1 [shape = 'u32[144,128]{1,0:T(1,128)}', space=vmem, size = 0x12000, scoped, tag = 'internal scratch']
  %s0 = inlined_call_operand.vmem [shape: bf16[2,256,36], index: 0, kind: input, shape index: {}]
  %s1 = inlined_call_operand.vmem [shape: bf16[36,32], index: 1, kind: input, shape index: {}]
  %s2 = inlined_call_operand.vmem [shape: f32[1,32], index: 2, kind: input, shape index: {}]
  %s3 = inlined_call_operand.vmem [shape: f32[2,32], index: 3, kind: output, shape index: {}]
  %s4 = sld [smem:[#allocation0]]
  $region49: #{model_forward.2} parent=0
    _
  %s6 = ssub.s32 1, %s4
  %s7 = scalar_select 0, %s6, %s4
  loop: start=0, step=1, limit=4
  $region2: #{model_forward.2} parent=0 // loop_pre_header
    _
  $region3: #{model_forward.2} parent=0 // loop_header
    %s9 = sphi 0, %s13
    %p10 = scmp.ge.s32.totalorder %s9, 4
    %s16 = sphi 0, %s28
    %s17 = sphi 0, %s24
    %s18 = sphi 0, %s16
    %s19 = sphi 0, %s17
    %s20 = sphi 0, %s18
    %s21 = sphi 0, %s19
    %s33 = sphi 0, %s35
    %s36 = sphi 0, %s33
    %s37 = sphi 0, %s36
    %s53 = sphi 0, %s37
    %s57 = sphi 0, %s57
    %s59 = sphi 0, %s57
    %s60 = sphi 0, %s59
    %s74 = sphi 0, %s60
    %s78 = sphi 0, %s78
    %s80 = sphi 0, %s78
    %s81 = sphi 0, %s80
    %s95 = sphi 0, %s81
    %s99 = sphi 0, %s99
    %s101 = sphi 0, %s99
    %s102 = sphi 0, %s101
    %s116 = sphi 0, %s102
  $region4: #{model_forward.2} parent=0 // loop_header_branch
    %12 = sbr.rel (%p10) target = $region8
  $region5: #{model_forward.2} parent=0 // loop_body
    %s14 = ssub.s32 %s9, 1
    %s15 = ssub.s32 %s9, 2
    %s22 = sadd.s32 1, %s17
    %p23 = scmp.ge.s32.totalorder %s22, 1
    %s24 = scalar_select %p23, 0, %s22
    %s25 = sadd.s32 1, %s16
    %s26 = scalar_select %p23, %s25, %s16
    %p27 = scmp.ge.s32.totalorder %s26, 2
    %s28 = scalar_select %p27, 0, %s26
    %s29 = ssub.s32 %s16, %s28
    %s30 = ssub.s32 %s17, %s24
    %s31 = sor.u32 %s29, %s30
    %p32 = scmp.eq.s32.totalorder %s31, 0
    %s34 = sadd.s32 %s33, 1
    %s35 = scalar_select %p32, %s33, %s34
    %p38 = pneg %p32
    %p39 = scmp.eq.s32.totalorder %s9, 1
    %p40 = por %p38, %p39
    %p41 = scmp.ne.s32.totalorder %s33, %s36
    %p42 = scmp.eq.s32.totalorder %s9, 0
    %p43 = por %p41, %p42
    %p44 = scmp.ne.s32.totalorder %s33, %s36
    %p45 = scmp.eq.s32.totalorder %s14, 1
    %p46 = por %p44, %p45
    %p47 = scmp.ne.s32.totalorder %s36, %s37
    %p48 = scmp.eq.s32.totalorder %s14, 0
    %p49 = por %p47, %p48
    %p50 = scmp.ne.s32.totalorder %s36, %s37
    %p51 = scmp.eq.s32.totalorder %s15, 1
    %p52 = por %p50, %p51
    %p54 = scmp.ne.s32.totalorder %s37, %s53
    %p55 = scmp.eq.s32.totalorder %s15, 0
    %p56 = por %p54, %p55
    %s58 = sadd.s32 %s57, 1
    %p61 = scmp.eq.s32.totalorder %s9, 1
    %p62 = scmp.ne.s32.totalorder %s57, %s59
    %p63 = scmp.eq.s32.totalorder %s9, 0
    %p64 = por %p62, %p63
    %p65 = scmp.ne.s32.totalorder %s57, %s59
    %p66 = scmp.eq.s32.totalorder %s14, 1
    %p67 = por %p65, %p66
    %p68 = scmp.ne.s32.totalorder %s59, %s60
    %p69 = scmp.eq.s32.totalorder %s14, 0
    %p70 = por %p68, %p69
    %p71 = scmp.ne.s32.totalorder %s59, %s60
    %p72 = scmp.eq.s32.totalorder %s15, 1
    %p73 = por %p71, %p72
    %p75 = scmp.ne.s32.totalorder %s60, %s74
    %p76 = scmp.eq.s32.totalorder %s15, 0
    %p77 = por %p75, %p76
    %s79 = sadd.s32 %s78, 1
    %p82 = scmp.eq.s32.totalorder %s9, 1
    %p83 = scmp.ne.s32.totalorder %s78, %s80
    %p84 = scmp.eq.s32.totalorder %s9, 0
    %p85 = por %p83, %p84
    %p86 = scmp.ne.s32.totalorder %s78, %s80
    %p87 = scmp.eq.s32.totalorder %s14, 1
    %p88 = por %p86, %p87
    %p89 = scmp.ne.s32.totalorder %s80, %s81
    %p90 = scmp.eq.s32.totalorder %s14, 0
    %p91 = por %p89, %p90
    %p92 = scmp.ne.s32.totalorder %s80, %s81
    %p93 = scmp.eq.s32.totalorder %s15, 1
    %p94 = por %p92, %p93
    %p96 = scmp.ne.s32.totalorder %s81, %s95
    %p97 = scmp.eq.s32.totalorder %s15, 0
    %p98 = por %p96, %p97
    %s100 = sadd.s32 %s99, 1
    %p103 = scmp.eq.s32.totalorder %s9, 1
    %p104 = scmp.ne.s32.totalorder %s99, %s101
    %p105 = scmp.eq.s32.totalorder %s9, 0
    %p106 = por %p104, %p105
    %p107 = scmp.ne.s32.totalorder %s99, %s101
    %p108 = scmp.eq.s32.totalorder %s14, 1
    %p109 = por %p107, %p108
    %p110 = scmp.ne.s32.totalorder %s101, %s102
    %p111 = scmp.eq.s32.totalorder %s14, 0
    %p112 = por %p110, %p111
    %p113 = scmp.ne.s32.totalorder %s101, %s102
    %p114 = scmp.eq.s32.totalorder %s15, 1
    %p115 = por %p113, %p114
    %p117 = scmp.ne.s32.totalorder %s102, %s116
    %p118 = scmp.eq.s32.totalorder %s15, 0
    %p119 = por %p117, %p118
    %p120 = scmp.le.s32.totalorder 1, %s9
    %p121 = scmp.lt.s32.totalorder %s9, 3
    %p122 = pnand %p120, %p121
    %p123 = pneg %p122
    // Predicated region
    $region9: #{model_forward.2} parent=5 // pred_check
      _
    $region10: #{model_forward.2} parent=5 // pred_check_branch
      %125 = sbr.rel (%p122) target = $region12
    $region11: #{model_forward.2} parent=5 // pred_region
      %s126 = ssub.s32 %s9, 1
      // Predicated region
      $region13: #{model_forward.2} parent=11 // pred_check
        %p127 = pneg %p70
      $region14: #{model_forward.2} parent=11 // pred_check_branch
        %129 = sbr.rel (%p127) target = $region16
      $region15: #{model_forward.2} parent=11 // pred_region
        _
      $region16: #{model_forward.2} parent=11 // pred_fallthru
        _
      // Predicated region
      $region17: #{model_forward.2} parent=11 // pred_check
        %p130 = pneg %p91
      $region18: #{model_forward.2} parent=11 // pred_check_branch
        %132 = sbr.rel (%p130) target = $region20
      $region19: #{model_forward.2} parent=11 // pred_region
        _
      $region20: #{model_forward.2} parent=11 // pred_fallthru
        _
    $region12: #{model_forward.2} parent=5 // pred_fallthru
      _
    %p133 = scmp.lt.s32.totalorder %s9, 2
    // Predicated region
    $region21: #{model_forward.2} parent=5 // pred_check
      %p134 = pneg %p133
    $region22: #{model_forward.2} parent=5 // pred_check_branch
      %136 = sbr.rel (%p134) target = $region24
    $region23: #{model_forward.2} parent=5 // pred_region
      // Predicated region
      $region25: #{model_forward.2} parent=23 // pred_check
        %p137 = pneg %p43
      $region26: #{model_forward.2} parent=23 // pred_check_branch
        %139 = sbr.rel (%p137) target = $region28
      $region27: #{model_forward.2} parent=23 // pred_region
        %s140 = smul.u32 32, %s17
        %p141 = scmp.lt.s32.totalorder %s16, 1
        %s142 = scalar_select %p141, %s16, 1
        %p143 = scmp.lt.s32.totalorder %s140, 31
        %s144 = scalar_select %p143, %s140, 31
        %s145 = smul.addr %s142, 32
        %s146 = sadd.s32 %s144, %s145
        %s147 = smul.addr %s146, 4
        %s148 = scalar_lea.vmem %s0, %s147
        %s149 = smul.u32 32, %s17
      $region28: #{model_forward.2} parent=23 // pred_fallthru
        _
    $region24: #{model_forward.2} parent=5 // pred_fallthru
      _
    %p150 = scmp.le.s32.totalorder 1, %s9
    %p151 = scmp.lt.s32.totalorder %s9, 3
    %p152 = pnand %p150, %p151
    %p153 = pneg %p152
    // Predicated region
    $region29: #{model_forward.2} parent=5 // pred_check
      _
    $region30: #{model_forward.2} parent=5 // pred_check_branch
      %155 = sbr.rel (%p152) target = $region32
    $region31: #{model_forward.2} parent=5 // pred_region
      %s156 = ssub.s32 %s9, 1
      %s157 = smul.u32 32, %s19
      %p158 = scmp.lt.s32.totalorder %s18, 1
      %s159 = scalar_select %p158, %s18, 1
      %p160 = scmp.lt.s32.totalorder %s157, 31
      %s161 = scalar_select %p160, %s157, 31
      %s162 = smul.addr %s159, 32
      %s163 = sadd.s32 %s161, %s162
      %s164 = smul.addr %s163, 4
      %s165 = scalar_lea.vmem %s0, %s164
      %p166 = pneg %p49
      %p167 = pneg %p46
      %p168 = pneg %p70
      %p169 = pneg %p67
      %p170 = pneg %p91
      %p171 = pneg %p88
      %p172 = pneg %p112
      %p173 = pneg %p109
      %s174 = smul.u32 32, %s19
      %p175 = scmp.lt.s32.totalorder %s18, 1
      %s176 = scalar_select %p175, %s18, 1
      %p177 = scmp.lt.s32.totalorder %s174, 31
      %s178 = scalar_select %p177, %s174, 31
      %s179 = smul.addr %s176, 32
      %s180 = sadd.s32 %s178, %s179
      %s181 = smul.addr %s180, 4
      %s182 = scalar_lea.vmem %s0, %s181
      %s183 = smul.u32 32, %s19
      %p185 = scmp.eq.s32.totalorder %s18, 0
      %p186 = scmp.eq.s32.totalorder %s19, 0
      %p187 = pnand %p185, %p186
      %p188 = pneg %p187
      // Predicated region
      $region33: #{model_forward.2} parent=31 // pred_check
        _
      $region34: #{model_forward.2} parent=31 // pred_check_branch
        %190 = sbr.rel (%p187) target = $region36
      $region35: #{model_forward.2} parent=31 // pred_region
        %vm191 = vcmask 254976
        %192 = vst.msk [vmem:[%s3] sm:$0x3] %vm191, 0.0
      $region36: #{model_forward.2} parent=31 // pred_fallthru
        _
      %v193 = vld [vmem:[%s182] sm:$0xf]
      %v194 = vld [vmem:[%s182 + $0x4] sm:$0xf]
      %v195 = vld [vmem:[%s182 + $0x8] sm:$0xf]
      %v196 = vld [vmem:[%s182 + $0xc] sm:$0xf]
      %v197 = vld [vmem:[%s182 + $0x10] sm:$0xf]
      %v198 = vld [vmem:[%s182 + $0x14] sm:$0xf]
      %v199 = vld [vmem:[%s182 + $0x18] sm:$0xf]
      %v200 = vld [vmem:[%s182 + $0x1c] sm:$0xf]
      %v201 = vld [vmem:[%s182 + $0x20] sm:$0xf]
      %v202 = vld [vmem:[%s182 + $0x24] sm:$0xf]
      %v203 = vld [vmem:[%s182 + $0x28] sm:$0xf]
      %v204 = vld [vmem:[%s182 + $0x2c] sm:$0xf]
      %v205 = vld [vmem:[%s182 + $0x30] sm:$0xf]
      %v206 = vld [vmem:[%s182 + $0x34] sm:$0xf]
      %v207 = vld [vmem:[%s182 + $0x38] sm:$0xf]
      %v208 = vld [vmem:[%s182 + $0x3c] sm:$0xf]
      %v209 = vld [vmem:[%s182 + $0x40] sm:$0xf]
      %v210 = vld [vmem:[%s182 + $0x44] sm:$0xf]
      %v211 = vld [vmem:[%s182 + $0x48] sm:$0xf]
      %v212 = vld [vmem:[%s182 + $0x4c] sm:$0xf]
      %v213 = vld [vmem:[%s182 + $0x50] sm:$0xf]
      %v214 = vld [vmem:[%s182 + $0x54] sm:$0xf]
      %v215 = vld [vmem:[%s182 + $0x58] sm:$0xf]
      %v216 = vld [vmem:[%s182 + $0x5c] sm:$0xf]
      %v217 = vld [vmem:[%s182 + $0x60] sm:$0xf]
      %v218 = vld [vmem:[%s182 + $0x64] sm:$0xf]
      %v219 = vld [vmem:[%s182 + $0x68] sm:$0xf]
      %v220 = vld [vmem:[%s182 + $0x6c] sm:$0xf]
      %v221 = vld [vmem:[%s182 + $0x70] sm:$0xf]
      %v222 = vld [vmem:[%s182 + $0x74] sm:$0xf]
      %v223 = vld [vmem:[%s182 + $0x78] sm:$0xf]
      %v224 = vld [vmem:[%s182 + $0x7c] sm:$0xf]
      %v225 = vld [vmem:[%s1] sm:$0xf]
      %v226 = vld [vmem:[%s1 + $0x4] sm:$0xf]
      %v227 = vld [vmem:[%s1 + $0x8] sm:$0xf]
      %v228 = vld [vmem:[%s1 + $0xc] sm:$0xf]
      %v229 = vld [vmem:[%s1 + $0x10] sm:$0x3]
      %v230 = vld [vmem:[%s2] sm:$0x1]
      %v232 = vlaneseq
      %v233 = vshrl.u32 %v232, 7
      %v234 = vsub.s32 0, %v233
      %v235 = vrot.slane %v230, %v234
      %v269 = vunpack.c.l.b16 %v193
      %v270 = vunpack.c.l.b16 %v194
      %v271 = vunpack.c.l.b16 %v195
      %v272 = vunpack.c.l.b16 %v196
      %v273 = vunpack.c.l.b16 %v197
      %v274 = vunpack.c.l.b16 %v198
      %v275 = vunpack.c.l.b16 %v199
      %v276 = vunpack.c.l.b16 %v200
      %v277 = vunpack.c.l.b16 %v201
      %v278 = vunpack.c.l.b16 %v202
      %v279 = vunpack.c.l.b16 %v203
      %v280 = vunpack.c.l.b16 %v204
      %v281 = vunpack.c.l.b16 %v205
      %v282 = vunpack.c.l.b16 %v206
      %v283 = vunpack.c.l.b16 %v207
      %v284 = vunpack.c.l.b16 %v208
      %v285 = vunpack.c.l.b16 %v209
      %v286 = vunpack.c.l.b16 %v210
      %v287 = vunpack.c.l.b16 %v211
      %v288 = vunpack.c.l.b16 %v212
      %v289 = vunpack.c.l.b16 %v213
      %v290 = vunpack.c.l.b16 %v214
      %v291 = vunpack.c.l.b16 %v215
      %v292 = vunpack.c.l.b16 %v216
      %v293 = vunpack.c.l.b16 %v217
      %v294 = vunpack.c.l.b16 %v218
      %v295 = vunpack.c.l.b16 %v219
      %v296 = vunpack.c.l.b16 %v220
      %v297 = vunpack.c.l.b16 %v221
      %v298 = vunpack.c.l.b16 %v222
      %v299 = vunpack.c.l.b16 %v223
      %v300 = vunpack.c.l.b16 %v224
      %v301 = vpack.c.b16 %v270, %v269
      %v302 = vpack.c.b16 %v272, %v271
      %v303 = vpack.c.b16 %v274, %v273
      %v304 = vpack.c.b16 %v276, %v275
      %v305 = vpack.c.b16 %v278, %v277
      %v306 = vpack.c.b16 %v280, %v279
      %v307 = vpack.c.b16 %v282, %v281
      %v308 = vpack.c.b16 %v284, %v283
      %v309 = vpack.c.b16 %v286, %v285
      %v310 = vpack.c.b16 %v288, %v287
      %v311 = vpack.c.b16 %v290, %v289
      %v312 = vpack.c.b16 %v292, %v291
      %v313 = vpack.c.b16 %v294, %v293
      %v314 = vpack.c.b16 %v296, %v295
      %v315 = vpack.c.b16 %v298, %v297
      %v316 = vpack.c.b16 %v300, %v299
      %v322 = vunpack.c.l.b16 %v225
      %v323 = vunpack.c.l.b16 %v226
      %v324 = vunpack.c.l.b16 %v227
      %v325 = vunpack.c.l.b16 %v228
      %v326 = vunpack.c.l.b16 %v229
      %v327 = vpack.c.b16 %v323, %v322
      %v328 = vpack.c.b16 %v325, %v324
      %v329 = vpack.c.b16 %v326, %v326
      %vm332 = vcmask 293888
      %v334 = vsel %vm332, %v301, 0
      %v337 = vsel %vm332, %v302, 0
      %v340 = vsel %vm332, %v303, 0
      %v343 = vsel %vm332, %v304, 0
      %v346 = vsel %vm332, %v305, 0
      %v349 = vsel %vm332, %v306, 0
      %v352 = vsel %vm332, %v307, 0
      %v355 = vsel %vm332, %v308, 0
      %v358 = vsel %vm332, %v309, 0
      %v361 = vsel %vm332, %v310, 0
      %v364 = vsel %vm332, %v311, 0
      %v367 = vsel %vm332, %v312, 0
      %v370 = vsel %vm332, %v313, 0
      %v373 = vsel %vm332, %v314, 0
      %v376 = vsel %vm332, %v315, 0
      %v379 = vsel %vm332, %v316, 0
      %vm381 = vcmask 1041408
      %v383 = vsel %vm381, %v329, 0
      %385 = vmatprep.subr.bf16.mxu0 0
      %386 = vmatpush1.bf16.msra.mxu0 %v327
      %387 = vmatprep.subr.bf16.mxu0 0
      %388 = vmatpush1.bf16.msra.mxu0 %v328
      %389 = vmatprep.subr.bf16.mxu0 0
      %390 = vmatpush1.bf16.msra.mxu0 %v383
      %391 = vmatprep.subr.bf16.mxu0 0
      %392 = vmatpush1.bf16.msra.mxu0 0
      %393 = vmatprep.subr.bf16.mxu0 0
      %394 = vmatpush1.bf16.msra.mxu0 0
      %395 = vmatprep.subr.bf16.mxu0 0
      %396 = vmatpush1.bf16.msra.mxu0 0
      %397 = vmatprep.subr.bf16.mxu0 0
      %398 = vmatpush1.bf16.msra.mxu0 0
      %399 = vmatprep.subr.bf16.mxu0 0
      %400 = vmatpush1.bf16.msra.mxu0 0
      %401 = vmatprep.subr.bf16.mxu0 0
      %402 = vmatpush1.bf16.msra.mxu0 0
      %403 = vmatprep.subr.bf16.mxu0 0
      %404 = vmatpush1.bf16.msra.mxu0 0
      %405 = vmatprep.subr.bf16.mxu0 0
      %406 = vmatpush1.bf16.msra.mxu0 0
      %407 = vmatprep.subr.bf16.mxu0 0
      %408 = vmatpush1.bf16.msra.mxu0 0
      %409 = vmatprep.subr.bf16.mxu0 0
      %410 = vmatpush1.bf16.msra.mxu0 0
      %411 = vmatprep.subr.bf16.mxu0 0
      %412 = vmatpush1.bf16.msra.mxu0 0
      %413 = vmatprep.subr.bf16.mxu0 0
      %414 = vmatpush1.bf16.msra.mxu0 0
      %415 = vmatprep.subr.bf16.mxu0 0
      %416 = vmatpush1.bf16.msra.mxu0 0
      %417 = vmatprep.mubr.bf16.mxu0 0
      %418 = vmatmul.mubr.bf16.gmra.mrb[0].mxu0 %v334
      %v419 = vpop.f32.mrb[0].mxu0
      %v420 = vadd.f32 %v235, %v419
      %v421 = vpop.f32.mrb[0].mxu0
      %v422 = vpop.f32.mrb[0].mxu0
      %v423 = vadd.f32 %v235, %v422
      %v424 = vpop.f32.mrb[0].mxu0
      %425 = vmatprep.mubr.bf16.mxu0 0
      %426 = vmatmul.mubr.bf16.gmra.mrb[0].mxu0 %v337
      %v427 = vpop.f32.mrb[0].mxu0
      %v428 = vadd.f32 %v235, %v427
      %v429 = vpop.f32.mrb[0].mxu0
      %v430 = vpop.f32.mrb[0].mxu0
      %v431 = vadd.f32 %v235, %v430
      %v432 = vpop.f32.mrb[0].mxu0
      %433 = vmatprep.mubr.bf16.mxu0 0
      %434 = vmatmul.mubr.bf16.gmra.mrb[0].mxu0 %v340
      %v435 = vpop.f32.mrb[0].mxu0
      %v436 = vadd.f32 %v235, %v435
      %v437 = vpop.f32.mrb[0].mxu0
      %v438 = vpop.f32.mrb[0].mxu0
      %v439 = vadd.f32 %v235, %v438
      %v440 = vpop.f32.mrb[0].mxu0
      %441 = vmatprep.mubr.bf16.mxu0 0
      %442 = vmatmul.mubr.bf16.gmra.mrb[0].mxu0 %v343
      %v443 = vpop.f32.mrb[0].mxu0
      %v444 = vadd.f32 %v235, %v443
      %v445 = vpop.f32.mrb[0].mxu0
      %v446 = vpop.f32.mrb[0].mxu0
      %v447 = vadd.f32 %v235, %v446
      %v448 = vpop.f32.mrb[0].mxu0
      %449 = vmatprep.mubr.bf16.mxu0 0
      %450 = vmatmul.mubr.bf16.gmra.mrb[0].mxu0 %v346
      %v451 = vpop.f32.mrb[0].mxu0
      %v452 = vadd.f32 %v235, %v451
      %v453 = vpop.f32.mrb[0].mxu0
      %v454 = vpop.f32.mrb[0].mxu0
      %v455 = vadd.f32 %v235, %v454
      %v456 = vpop.f32.mrb[0].mxu0
      %457 = vmatprep.mubr.bf16.mxu0 0
      %458 = vmatmul.mubr.bf16.gmra.mrb[0].mxu0 %v349
      %v459 = vpop.f32.mrb[0].mxu0
      %v460 = vadd.f32 %v235, %v459
      %v461 = vpop.f32.mrb[0].mxu0
      %v462 = vpop.f32.mrb[0].mxu0
      %v463 = vadd.f32 %v235, %v462
      %v464 = vpop.f32.mrb[0].mxu0
      %465 = vmatprep.mubr.bf16.mxu0 0
      %466 = vmatmul.mubr.bf16.gmra.mrb[0].mxu0 %v352
      %v467 = vpop.f32.mrb[0].mxu0
      %v468 = vadd.f32 %v235, %v467
      %v469 = vpop.f32.mrb[0].mxu0
      %v470 = vpop.f32.mrb[0].mxu0
      %v471 = vadd.f32 %v235, %v470
      %v472 = vpop.f32.mrb[0].mxu0
      %473 = vmatprep.mubr.bf16.mxu0 0
      %474 = vmatmul.mubr.bf16.gmra.mrb[0].mxu0 %v355
      %v475 = vpop.f32.mrb[0].mxu0
      %v476 = vadd.f32 %v235, %v475
      %v477 = vpop.f32.mrb[0].mxu0
      %v478 = vpop.f32.mrb[0].mxu0
      %v479 = vadd.f32 %v235, %v478
      %v480 = vpop.f32.mrb[0].mxu0
      %481 = vmatprep.mubr.bf16.mxu0 0
      %482 = vmatmul.mubr.bf16.gmra.mrb[0].mxu0 %v358
      %v483 = vpop.f32.mrb[0].mxu0
      %v484 = vadd.f32 %v235, %v483
      %v485 = vpop.f32.mrb[0].mxu0
      %v486 = vpop.f32.mrb[0].mxu0
      %v487 = vadd.f32 %v235, %v486
      %v488 = vpop.f32.mrb[0].mxu0
      %489 = vmatprep.mubr.bf16.mxu0 0
      %490 = vmatmul.mubr.bf16.gmra.mrb[0].mxu0 %v361
      %v491 = vpop.f32.mrb[0].mxu0
      %v492 = vadd.f32 %v235, %v491
      %v493 = vpop.f32.mrb[0].mxu0
      %v494 = vpop.f32.mrb[0].mxu0
      %v495 = vadd.f32 %v235, %v494
      %v496 = vpop.f32.mrb[0].mxu0
      %497 = vmatprep.mubr.bf16.mxu0 0
      %498 = vmatmul.mubr.bf16.gmra.mrb[0].mxu0 %v364
      %v499 = vpop.f32.mrb[0].mxu0
      %v500 = vadd.f32 %v235, %v499
      %v501 = vpop.f32.mrb[0].mxu0
      %v502 = vpop.f32.mrb[0].mxu0
      %v503 = vadd.f32 %v235, %v502
      %v504 = vpop.f32.mrb[0].mxu0
      %505 = vmatprep.mubr.bf16.mxu0 0
      %506 = vmatmul.mubr.bf16.gmra.mrb[0].mxu0 %v367
      %v507 = vpop.f32.mrb[0].mxu0
      %v508 = vadd.f32 %v235, %v507
      %v509 = vpop.f32.mrb[0].mxu0
      %v510 = vpop.f32.mrb[0].mxu0
      %v511 = vadd.f32 %v235, %v510
      %v512 = vpop.f32.mrb[0].mxu0
      %513 = vmatprep.mubr.bf16.mxu0 0
      %514 = vmatmul.mubr.bf16.gmra.mrb[0].mxu0 %v370
      %v515 = vpop.f32.mrb[0].mxu0
      %v516 = vadd.f32 %v235, %v515
      %v517 = vpop.f32.mrb[0].mxu0
      %v518 = vpop.f32.mrb[0].mxu0
      %v519 = vadd.f32 %v235, %v518
      %v520 = vpop.f32.mrb[0].mxu0
      %521 = vmatprep.mubr.bf16.mxu0 0
      %522 = vmatmul.mubr.bf16.gmra.mrb[0].mxu0 %v373
      %v523 = vpop.f32.mrb[0].mxu0
      %v524 = vadd.f32 %v235, %v523
      %v525 = vpop.f32.mrb[0].mxu0
      %v526 = vpop.f32.mrb[0].mxu0
      %v527 = vadd.f32 %v235, %v526
      %v528 = vpop.f32.mrb[0].mxu0
      %529 = vmatprep.mubr.bf16.mxu0 0
      %530 = vmatmul.mubr.bf16.gmra.mrb[0].mxu0 %v376
      %v531 = vpop.f32.mrb[0].mxu0
      %v532 = vadd.f32 %v235, %v531
      %v533 = vpop.f32.mrb[0].mxu0
      %v534 = vpop.f32.mrb[0].mxu0
      %v535 = vadd.f32 %v235, %v534
      %v536 = vpop.f32.mrb[0].mxu0
      %537 = vmatprep.mubr.bf16.mxu0 0
      %538 = vmatmul.mubr.bf16.gmra.mrb[0].mxu0 %v379
      %v539 = vpop.f32.mrb[0].mxu0
      %v540 = vadd.f32 %v235, %v539
      %v541 = vpop.f32.mrb[0].mxu0
      %v542 = vpop.f32.mrb[0].mxu0
      %v543 = vadd.f32 %v235, %v542
      %v544 = vpop.f32.mrb[0].mxu0
      %545 = vdwg.mxu0
      %v546 = vmax.f32 %v420, 0.0
      %v547 = vmax.f32 %v423, 0.0
      %v548 = vmax.f32 %v428, 0.0
      %v549 = vmax.f32 %v431, 0.0
      %v550 = vmax.f32 %v436, 0.0
      %v551 = vmax.f32 %v439, 0.0
      %v552 = vmax.f32 %v444, 0.0
      %v553 = vmax.f32 %v447, 0.0
      %v554 = vmax.f32 %v452, 0.0
      %v555 = vmax.f32 %v455, 0.0
      %v556 = vmax.f32 %v460, 0.0
      %v557 = vmax.f32 %v463, 0.0
      %v558 = vmax.f32 %v468, 0.0
      %v559 = vmax.f32 %v471, 0.0
      %v560 = vmax.f32 %v476, 0.0
      %v561 = vmax.f32 %v479, 0.0
      %v562 = vmax.f32 %v484, 0.0
      %v563 = vmax.f32 %v487, 0.0
      %v564 = vmax.f32 %v492, 0.0
      %v565 = vmax.f32 %v495, 0.0
      %v566 = vmax.f32 %v500, 0.0
      %v567 = vmax.f32 %v503, 0.0
      %v568 = vmax.f32 %v508, 0.0
      %v569 = vmax.f32 %v511, 0.0
      %v570 = vmax.f32 %v516, 0.0
      %v571 = vmax.f32 %v519, 0.0
      %v572 = vmax.f32 %v524, 0.0
      %v573 = vmax.f32 %v527, 0.0
      %v574 = vmax.f32 %v532, 0.0
      %v575 = vmax.f32 %v535, 0.0
      %v576 = vmax.f32 %v540, 0.0
      %v577 = vmax.f32 %v543, 0.0
      %vm578 = vcmask 261120
      %v579 = vsel %vm578, %v546, 0.0
      %v580 = vsel %vm578, %v547, 0.0
      %v581 = vadd.f32 %v579, %v580
      %v582 = vsel %vm578, %v548, 0.0
      %v583 = vadd.f32 %v581, %v582
      %v584 = vsel %vm578, %v549, 0.0
      %v585 = vadd.f32 %v583, %v584
      %v586 = vsel %vm578, %v550, 0.0
      %v587 = vadd.f32 %v585, %v586
      %v588 = vsel %vm578, %v551, 0.0
      %v589 = vadd.f32 %v587, %v588
      %v590 = vsel %vm578, %v552, 0.0
      %v591 = vadd.f32 %v589, %v590
      %v592 = vsel %vm578, %v553, 0.0
      %v593 = vadd.f32 %v591, %v592
      %v594 = vsel %vm578, %v554, 0.0
      %v595 = vadd.f32 %v593, %v594
      %v596 = vsel %vm578, %v555, 0.0
      %v597 = vadd.f32 %v595, %v596
      %v598 = vsel %vm578, %v556, 0.0
      %v599 = vadd.f32 %v597, %v598
      %v600 = vsel %vm578, %v557, 0.0
      %v601 = vadd.f32 %v599, %v600
      %v602 = vsel %vm578, %v558, 0.0
      %v603 = vadd.f32 %v601, %v602
      %v604 = vsel %vm578, %v559, 0.0
      %v605 = vadd.f32 %v603, %v604
      %v606 = vsel %vm578, %v560, 0.0
      %v607 = vadd.f32 %v605, %v606
      %v608 = vsel %vm578, %v561, 0.0
      %v609 = vadd.f32 %v607, %v608
      %v610 = vsel %vm578, %v562, 0.0
      %v611 = vadd.f32 %v609, %v610
      %v612 = vsel %vm578, %v563, 0.0
      %v613 = vadd.f32 %v611, %v612
      %v614 = vsel %vm578, %v564, 0.0
      %v615 = vadd.f32 %v613, %v614
      %v616 = vsel %vm578, %v565, 0.0
      %v617 = vadd.f32 %v615, %v616
      %v618 = vsel %vm578, %v566, 0.0
      %v619 = vadd.f32 %v617, %v618
      %v620 = vsel %vm578, %v567, 0.0
      %v621 = vadd.f32 %v619, %v620
      %v622 = vsel %vm578, %v568, 0.0
      %v623 = vadd.f32 %v621, %v622
      %v624 = vsel %vm578, %v569, 0.0
      %v625 = vadd.f32 %v623, %v624
      %v626 = vsel %vm578, %v570, 0.0
      %v627 = vadd.f32 %v625, %v626
      %v628 = vsel %vm578, %v571, 0.0
      %v629 = vadd.f32 %v627, %v628
      %v630 = vsel %vm578, %v572, 0.0
      %v631 = vadd.f32 %v629, %v630
      %v632 = vsel %vm578, %v573, 0.0
      %v633 = vadd.f32 %v631, %v632
      %v634 = vsel %vm578, %v574, 0.0
      %v635 = vadd.f32 %v633, %v634
      %v636 = vsel %vm578, %v575, 0.0
      %v637 = vadd.f32 %v635, %v636
      %v638 = vsel %vm578, %v576, 0.0
      %v639 = vadd.f32 %v637, %v638
      %v640 = vsel %vm578, %v577, 0.0
      %v641 = vadd.f32 %v639, %v640
      %v642 = vrot.slane %v641, 4
      %v643 = vadd.f32 %v641, %v642
      %v644 = vrot.slane %v643, 2
      %v645 = vadd.f32 %v643, %v644
      %v646 = vrot.slane %v645, 1
      %v647 = vadd.f32 %v645, %v646
      %v648 = vmul.f32 %v647, 0.00390625
      %v649 = vlaneseq
      %v650 = vshrl.u32 %v649, 7
      %v651 = vld [vmem:[%s3] sm:$0x3]
      %v652 = vstv %s18
      %vm653 = vcmp.eq.s32.totalorder %v650, %v652
      %v654 = vsel %vm653, %v648, 0.0
      %v655 = vadd.f32 %v651, %v654
      %vm656 = vcmask 254976
      %657 = vst.msk [vmem:[%s3] sm:$0x3] %vm656, %v655
      // Predicated region
      $region37: #{model_forward.2} parent=31 // pred_check
        %p658 = pneg %p109
      $region38: #{model_forward.2} parent=31 // pred_check_branch
        %660 = sbr.rel (%p658) target = $region40
      $region39: #{model_forward.2} parent=31 // pred_region
        _
      $region40: #{model_forward.2} parent=31 // pred_fallthru
        _
      // Predicated region
      $region41: #{model_forward.2} parent=31 // pred_check
        %p661 = pneg %p109
      $region42: #{model_forward.2} parent=31 // pred_check_branch
        %663 = sbr.rel (%p661) target = $region44
      $region43: #{model_forward.2} parent=31 // pred_region
        _
      $region44: #{model_forward.2} parent=31 // pred_fallthru
        _
    $region32: #{model_forward.2} parent=5 // pred_fallthru
      _
    %p664 = scmp.le.s32.totalorder 2, %s9
    // Predicated region
    $region45: #{model_forward.2} parent=5 // pred_check
      %p665 = pneg %p664
    $region46: #{model_forward.2} parent=5 // pred_check_branch
      %667 = sbr.rel (%p665) target = $region48
    $region47: #{model_forward.2} parent=5 // pred_region
      %s668 = ssub.s32 %s9, 2
    $region48: #{model_forward.2} parent=5 // pred_fallthru
      _
  $region6: #{model_forward.2} parent=0 // loop_footer
    %s13 = sadd.s32 1, %s9
  $region7: #{model_forward.2} parent=0 // loop_footer_branch
    %8 = sbr.rel target = $region3
  $region8: #{model_forward.2} parent=0 // loop_exit
    _

</llo_original>
